<compile_context>
chip_gen: v7x
topology: tpu7x:2x2x1
jax: 0.10.0
libtpu: 0.0.40
codegen_flags: <defaults>
</compile_context>

<pallas_src>
import functools
import math

import jax
import jax.numpy as jnp
from jax.experimental import pallas as pl
from jax.experimental.pallas import tpu as pltpu


def _round_up(x, m):
    return ((x + m - 1) // m) * m


def _cdiv(a, b):
    return (a + b - 1) // b


def _soft_iou_sums_kernel(pred_ref, targ_ref, acc_ref, *, rows_valid,
                          rows_per_tile, tiles_per_split, any_masking):
    """Accumulate per-(sample, core-split) partial sums into (3, 8, 128) slabs.

    pred_ref, targ_ref: (1, rows_per_tile, 128) VMEM tiles.
    acc_ref:            (1, 1, 3, 8, 128) accumulator block, resident across
                        the inner (row-tile) grid axis.
                        Slot 0 = sum(sigmoid(pred) * target)
                        Slot 1 = sum(sigmoid(pred))
                        Slot 2 = sum(target)
    """
    c = pl.program_id(1)   # core-split index
    j = pl.program_id(2)   # row-tile index within this split (reduction axis)

    @pl.when(j == 0)
    def _():
        acc_ref[...] = jnp.zeros_like(acc_ref)

    def load():
        x = pred_ref[...].astype(jnp.float32)          # (1, rpt, 128)
        # sigmoid as a single EUP transcendental: 0.5 * (tanh(x/2) + 1)
        p = 0.5 * (jnp.tanh(0.5 * x) + 1.0)
        t = targ_ref[...].astype(jnp.float32)
        return p, t

    def fold(v):
        # (1, rows_per_tile, 128) -> (8, 128): vreg-aligned whole-register
        # adds (pure VPU, no cross-lane work in the steady-state loop).
        return v.reshape(rows_per_tile // 8, 8, 128).sum(axis=0)

    def accumulate(p, t):
        inter = p * t
        acc_ref[0, 0, 0] += fold(inter)
        acc_ref[0, 0, 1] += fold(p)
        acc_ref[0, 0, 2] += fold(t)

    if not any_masking:
        # Fast path compiled when every tile is fully valid.
        p, t = load()
        accumulate(p, t)
    else:
        row_start = (c * tiles_per_split + j) * rows_per_tile
        tile_full = row_start + rows_per_tile <= rows_valid

        @pl.when(tile_full)
        def _():
            p, t = load()
            accumulate(p, t)

        @pl.when(jnp.logical_not(tile_full))
        def _():
            # Only the overhanging (or phantom, fully-out-of-range) tile pays
            # for iota + compare + 2x where.  Mask BEFORE the product so
            # garbage in the out-of-bounds block region cannot leak.
            p, t = load()
            row = jax.lax.broadcasted_iota(jnp.int32, p.shape, 1) + row_start
            valid = row < rows_valid
            p = jnp.where(valid, p, 0.0)
            t = jnp.where(valid, t, 0.0)
            accumulate(p, t)


def soft_iou_loss(pred, target, *, rows_per_tile=2048):
    """Pallas implementation of SoftLoULoss1.forward (smooth = 0.0)."""
    if pred.ndim > 4:
        pred = jnp.squeeze(pred, axis=2)
    if target.ndim > 4:
        target = jnp.squeeze(target, axis=2)
    if target.dtype == jnp.bool_:
        target = target.astype(jnp.int8)

    B = pred.shape[0]
    n = math.prod(pred.shape[1:])

    pred_flat = pred.reshape(B, n)
    targ_flat = target.reshape(B, n)

    # Ragged lane handling (rare path, skipped when n % 128 == 0): pad the
    # small tail so sigmoid(pad) == 0 for pred and pad == 0 for target.
    # TODO(synk): pad-free ragged path via a flat-element mask on the last
    # tile to avoid the full HBM copy jnp.pad implies for ragged shapes.
    lane_pad = (-n) % 128
    if lane_pad:
        pred_flat = jnp.pad(pred_flat, ((0, 0), (0, lane_pad)),
                            constant_values=-1e9)  # tanh/sigmoid -> exactly 0
        targ_flat = jnp.pad(targ_flat, ((0, 0), (0, lane_pad)),
                            constant_values=0)

    rows = (n + lane_pad) // 128
    pred3 = pred_flat.reshape(B, rows, 128)
    targ3 = targ_flat.reshape(B, rows, 128)

    # Sublane alignment for the narrowest streamed dtype (f32->8, bf16->16, i8->32).
    min_item = min(jnp.dtype(pred3.dtype).itemsize, jnp.dtype(targ3.dtype).itemsize)
    align = max(8, 32 // max(1, min_item))

    # Explicit 2-way split of the row axis so both v7x TensorCores get work
    # even at B == 1 (harmless serial axis on single-TC v5e/v6e).
    n_splits = 2

    rpt = max(align, min(rows_per_tile, rows))
    rpt = _round_up(rpt, align)
    tiles_per_split = _cdiv(rows, n_splits * rpt)
    # Re-balance: smallest aligned tile that still covers `rows` with this
    # tile count, so the splits get near-equal work and phantom tiles are
    # minimized (usually eliminated).
    rpt = _round_up(_cdiv(rows, n_splits * tiles_per_split), align)

    n_tiles = _cdiv(rows, rpt)                 # number of in-range row tiles
    total_tiles = n_splits * tiles_per_split   # tiles actually iterated
    any_masking = (total_tiles * rpt) != rows

    if total_tiles > n_tiles:
        # Clamp out-of-range tile indices onto the last valid block; those
        # iterations are fully masked to zero inside the kernel.
        def row_block(b, c, j):
            return (b, jnp.minimum(c * tiles_per_split + j, n_tiles - 1), 0)
    else:
        def row_block(b, c, j):
            return (b, c * tiles_per_split + j, 0)

    kernel = functools.partial(
        _soft_iou_sums_kernel,
        rows_valid=rows,
        rows_per_tile=rpt,
        tiles_per_split=tiles_per_split,
        any_masking=any_masking,
    )

    # Only raise the scoped-VMEM limit if a (user-requested) large tile needs
    # it; the default tile fits comfortably within every generation's default.
    block_bytes = rpt * 128 * (jnp.dtype(pred3.dtype).itemsize +
                               jnp.dtype(targ3.dtype).itemsize)
    vmem_needed = 2 * block_bytes + 2 * (3 * 8 * 128 * 4) + (1 << 20)
    cp_kwargs = dict(dimension_semantics=("parallel", "parallel", "arbitrary"))
    if vmem_needed > (12 << 20):
        cp_kwargs["vmem_limit_bytes"] = int(min(48 << 20, vmem_needed + (8 << 20)))

    acc = pl.pallas_call(
        kernel,
        out_shape=jax.ShapeDtypeStruct((B, n_splits, 3, 8, 128), jnp.float32),
        grid_spec=pltpu.PrefetchScalarGridSpec(
            num_scalar_prefetch=0,
            grid=(B, n_splits, tiles_per_split),
            in_specs=[
                pl.BlockSpec((1, rpt, 128), row_block),
                pl.BlockSpec((1, rpt, 128), row_block),
            ],
            out_specs=pl.BlockSpec((1, 1, 3, 8, 128),
                                   lambda b, c, j: (b, c, 0, 0, 0)),
        ),
        compiler_params=pltpu.CompilerParams(**cp_kwargs),
    )(pred3, targ3)

    # Tiny final reductions / scalar glue in plain JAX (B * 2 * 3 * 1024 floats).
    sums = acc.sum(axis=(1, 3, 4))  # (B, 3)
    inter_sum = sums[:, 0]
    pred_sum = sums[:, 1]
    targ_sum = sums[:, 2]
    smooth = 0.0
    per_sample = (inter_sum + smooth) / (pred_sum + targ_sum - inter_sum + smooth)
    return 1.0 - jnp.mean(per_sample)


def _reference(pred, target):
    if pred.ndim > 4:
        pred = jnp.squeeze(pred, axis=2)
    if target.ndim > 4:
        target = jnp.squeeze(target, axis=2)
    p = jax.nn.sigmoid(pred.astype(jnp.float32))
    t = target.astype(jnp.float32)
    inter = jnp.sum(p * t, axis=(1, 2, 3))
    ps = jnp.sum(p, axis=(1, 2, 3))
    ts = jnp.sum(t, axis=(1, 2, 3))
    return 1.0 - jnp.mean(inter / (ps + ts - inter))


if __name__ == "__main__":
    key = jax.random.PRNGKey(0)
    k1, k2, k3, k4 = jax.random.split(key, 4)

    # f32 case (shapes consistent with the PyTorch module's forward).
    B, C, H, W = 2, 4, 16, 16
    pred = jax.random.normal(k1, (B, C, H, W), dtype=jnp.float32)
    target = (jax.random.uniform(k2, (B, C, H, W)) > 0.5).astype(jnp.float32)

    loss = soft_iou_loss(pred, target)
    jax.block_until_ready(loss)
    ref = _reference(pred, target)
    assert jnp.allclose(loss, ref, atol=1e-5, rtol=1e-5), (loss, ref)

    # bf16 case: bandwidth-optimized path — kernel streams bf16 and upcasts
    # in-register (half the HBM bytes of the f32 path).
    B2, C2, H2, W2 = 2, 1, 64, 64
    pred_bf = jax.random.normal(k3, (B2, C2, H2, W2),
                                dtype=jnp.float32).astype(jnp.bfloat16)
    targ_bf = (jax.random.uniform(k4, (B2, C2, H2, W2)) > 0.5).astype(jnp.bfloat16)

    loss_bf = soft_iou_loss(pred_bf, targ_bf)
    jax.block_until_ready(loss_bf)
    ref_bf = _reference(pred_bf, targ_bf)
    assert jnp.allclose(loss_bf, ref_bf, atol=2e-5, rtol=2e-5), (loss_bf, ref_bf)

    print("KERNEL_OK")
</pallas_src>

<mosaic_0001>
module attributes {stable_mosaic.version = 11 : i64} {
  func.func @_soft_iou_sums_kernel(%arg0: i32, %arg1: i32, %arg2: i32, %arg3: memref<1x8x128xf32, #tpu.memory_space<vmem>>, %arg4: memref<1x8x128xf32, #tpu.memory_space<vmem>>, %arg5: memref<1x1x3x8x128xf32, #tpu.memory_space<vmem>>) attributes {dimension_semantics = [#tpu.dimension_semantics<parallel>, #tpu.dimension_semantics<parallel>, #tpu.dimension_semantics<arbitrary>], iteration_bounds = array<i64: 2, 2, 1>, scalar_prefetch = 0 : i64, scratch_operands = 0 : i64, tpu.core_type = #tpu.core_type<tc>, window_params = [{transform_indices = @transform_0, window_bounds = array<i64: 1, 8, 128>}, {transform_indices = @transform_1, window_bounds = array<i64: 1, 8, 128>}, {transform_indices = @transform_2, window_bounds = array<i64: 1, 1, 3, 8, 128>}]} {
    %c0_i32 = arith.constant 0 : i32
    %0 = arith.cmpi eq, %arg2, %c0_i32 : i32
    %1 = arith.extui %0 : i1 to i32
    %c0_i32_0 = arith.constant 0 : i32
    %2 = arith.cmpi ne, %1, %c0_i32_0 : i32
    scf.if %2 {
      %cst = arith.constant 0.000000e+00 : f32
      %13 = vector.broadcast %cst : f32 to vector<1x1x3x8x128xf32>
      %c0 = arith.constant 0 : index
      %c0_5 = arith.constant 0 : index
      %c0_6 = arith.constant 0 : index
      %c0_7 = arith.constant 0 : index
      %c0_8 = arith.constant 0 : index
      %14 = vector.load %arg5[%c0, %c0_5, %c0_6, %c0_7, %c0_8] : memref<1x1x3x8x128xf32, #tpu.memory_space<vmem>>, vector<1x1x3x8x128xf32>
      tpu.vector_store %arg5[%c0, %c0_5, %c0_6, %c0_7, %c0_8], %13 {strides = array<i32>} : memref<1x1x3x8x128xf32, #tpu.memory_space<vmem>>, vector<1x1x3x8x128xf32>,
    } else {
    }
    %c1_i32 = arith.constant 1 : i32
    %3 = arith.muli %arg1, %c1_i32 : i32
    %4 = arith.addi %3, %arg2 : i32
    %c8_i32 = arith.constant 8 : i32
    %5 = arith.muli %4, %c8_i32 : i32
    %c8_i32_1 = arith.constant 8 : i32
    %6 = arith.addi %5, %c8_i32_1 : i32
    %c8_i32_2 = arith.constant 8 : i32
    %7 = arith.cmpi sle, %6, %c8_i32_2 : i32
    %8 = arith.extui %7 : i1 to i32
    %c0_i32_3 = arith.constant 0 : i32
    %9 = arith.cmpi ne, %8, %c0_i32_3 : i32
    scf.if %9 {
      %c0 = arith.constant 0 : index
      %c0_5 = arith.constant 0 : index
      %c0_6 = arith.constant 0 : index
      %13 = vector.load %arg3[%c0, %c0_5, %c0_6] : memref<1x8x128xf32, #tpu.memory_space<vmem>>, vector<1x8x128xf32>
      %cst = arith.constant 5.000000e-01 : f32
      %14 = vector.broadcast %cst : f32 to vector<1x8x128xf32>
      %15 = arith.mulf %14, %13 : vector<1x8x128xf32>
      %16 = math.tanh %15 : vector<1x8x128xf32>
      %cst_7 = arith.constant 1.000000e+00 : f32
      %17 = vector.broadcast %cst_7 : f32 to vector<1x8x128xf32>
      %18 = arith.addf %16, %17 : vector<1x8x128xf32>
      %cst_8 = arith.constant 5.000000e-01 : f32
      %19 = vector.broadcast %cst_8 : f32 to vector<1x8x128xf32>
      %20 = arith.mulf %19, %18 : vector<1x8x128xf32>
      %c0_9 = arith.constant 0 : index
      %c0_10 = arith.constant 0 : index
      %c0_11 = arith.constant 0 : index
      %21 = vector.load %arg4[%c0_9, %c0_10, %c0_11] : memref<1x8x128xf32, #tpu.memory_space<vmem>>, vector<1x8x128xf32>
      %22 = arith.mulf %20, %21 : vector<1x8x128xf32>
      %c0_12 = arith.constant 0 : index
      %c0_13 = arith.constant 0 : index
      %c0_14 = arith.constant 0 : index
      %c0_15 = arith.constant 0 : index
      %c0_16 = arith.constant 0 : index
      %23 = vector.load %arg5[%c0_12, %c0_13, %c0_14, %c0_15, %c0_16] : memref<1x1x3x8x128xf32, #tpu.memory_space<vmem>>, vector<1x1x1x8x128xf32>
      %24 = vector.shape_cast %23 : vector<1x1x1x8x128xf32> to vector<8x128xf32>
      %cst_17 = arith.constant dense<0.000000e+00> : vector<8x128xf32>
      %25 = vector.multi_reduction <add>, %22, %cst_17 [0] : vector<1x8x128xf32> to vector<8x128xf32>
      %26 = arith.addf %24, %25 : vector<8x128xf32>
      %c0_18 = arith.constant 0 : index
      %c0_19 = arith.constant 0 : index
      %c0_20 = arith.constant 0 : index
      %c0_21 = arith.constant 0 : index
      %c0_22 = arith.constant 0 : index
      %27 = vector.load %arg5[%c0_18, %c0_19, %c0_20, %c0_21, %c0_22] : memref<1x1x3x8x128xf32, #tpu.memory_space<vmem>>, vector<1x1x1x8x128xf32>
      %28 = vector.shape_cast %27 : vector<1x1x1x8x128xf32> to vector<8x128xf32>
      %29 = vector.shape_cast %26 : vector<8x128xf32> to vector<1x1x1x8x128xf32>
      tpu.vector_store %arg5[%c0_18, %c0_19, %c0_20, %c0_21, %c0_22], %29 {strides = array<i32>} : memref<1x1x3x8x128xf32, #tpu.memory_space<vmem>>, vector<1x1x1x8x128xf32>,
      %c0_23 = arith.constant 0 : index
      %c0_24 = arith.constant 0 : index
      %c1 = arith.constant 1 : index
      %c0_25 = arith.constant 0 : index
      %c0_26 = arith.constant 0 : index
      %30 = vector.load %arg5[%c0_23, %c0_24, %c1, %c0_25, %c0_26] : memref<1x1x3x8x128xf32, #tpu.memory_space<vmem>>, vector<1x1x1x8x128xf32>
      %31 = vector.shape_cast %30 : vector<1x1x1x8x128xf32> to vector<8x128xf32>
      %cst_27 = arith.constant dense<0.000000e+00> : vector<8x128xf32>
      %32 = vector.multi_reduction <add>, %20, %cst_27 [0] : vector<1x8x128xf32> to vector<8x128xf32>
      %33 = arith.addf %31, %32 : vector<8x128xf32>
      %c0_28 = arith.constant 0 : index
      %c0_29 = arith.constant 0 : index
      %c1_30 = arith.constant 1 : index
      %c0_31 = arith.constant 0 : index
      %c0_32 = arith.constant 0 : index
      %34 = vector.load %arg5[%c0_28, %c0_29, %c1_30, %c0_31, %c0_32] : memref<1x1x3x8x128xf32, #tpu.memory_space<vmem>>, vector<1x1x1x8x128xf32>
      %35 = vector.shape_cast %34 : vector<1x1x1x8x128xf32> to vector<8x128xf32>
      %36 = vector.shape_cast %33 : vector<8x128xf32> to vector<1x1x1x8x128xf32>
      tpu.vector_store %arg5[%c0_28, %c0_29, %c1_30, %c0_31, %c0_32], %36 {strides = array<i32>} : memref<1x1x3x8x128xf32, #tpu.memory_space<vmem>>, vector<1x1x1x8x128xf32>,
      %c0_33 = arith.constant 0 : index
      %c0_34 = arith.constant 0 : index
      %c2 = arith.constant 2 : index
      %c0_35 = arith.constant 0 : index
      %c0_36 = arith.constant 0 : index
      %37 = vector.load %arg5[%c0_33, %c0_34, %c2, %c0_35, %c0_36] : memref<1x1x3x8x128xf32, #tpu.memory_space<vmem>>, vector<1x1x1x8x128xf32>
      %38 = vector.shape_cast %37 : vector<1x1x1x8x128xf32> to vector<8x128xf32>
      %cst_37 = arith.constant dense<0.000000e+00> : vector<8x128xf32>
      %39 = vector.multi_reduction <add>, %21, %cst_37 [0] : vector<1x8x128xf32> to vector<8x128xf32>
      %40 = arith.addf %38, %39 : vector<8x128xf32>
      %c0_38 = arith.constant 0 : index
      %c0_39 = arith.constant 0 : index
      %c2_40 = arith.constant 2 : index
      %c0_41 = arith.constant 0 : index
      %c0_42 = arith.constant 0 : index
      %41 = vector.load %arg5[%c0_38, %c0_39, %c2_40, %c0_41, %c0_42] : memref<1x1x3x8x128xf32, #tpu.memory_space<vmem>>, vector<1x1x1x8x128xf32>
      %42 = vector.shape_cast %41 : vector<1x1x1x8x128xf32> to vector<8x128xf32>
      %43 = vector.shape_cast %40 : vector<8x128xf32> to vector<1x1x1x8x128xf32>
      tpu.vector_store %arg5[%c0_38, %c0_39, %c2_40, %c0_41, %c0_42], %43 {strides = array<i32>} : memref<1x1x3x8x128xf32, #tpu.memory_space<vmem>>, vector<1x1x1x8x128xf32>,
    } else {
    }
    %true = arith.constant true
    %10 = arith.xori %7, %true : i1
    %11 = arith.extui %10 : i1 to i32
    %c0_i32_4 = arith.constant 0 : i32
    %12 = arith.cmpi ne, %11, %c0_i32_4 : i32
    scf.if %12 {
      %c0 = arith.constant 0 : index
      %c0_5 = arith.constant 0 : index
      %c0_6 = arith.constant 0 : index
      %13 = vector.load %arg3[%c0, %c0_5, %c0_6] : memref<1x8x128xf32, #tpu.memory_space<vmem>>, vector<1x8x128xf32>
      %cst = arith.constant 5.000000e-01 : f32
      %14 = vector.broadcast %cst : f32 to vector<1x8x128xf32>
      %15 = arith.mulf %14, %13 : vector<1x8x128xf32>
      %16 = math.tanh %15 : vector<1x8x128xf32>
      %cst_7 = arith.constant 1.000000e+00 : f32
      %17 = vector.broadcast %cst_7 : f32 to vector<1x8x128xf32>
      %18 = arith.addf %16, %17 : vector<1x8x128xf32>
      %cst_8 = arith.constant 5.000000e-01 : f32
      %19 = vector.broadcast %cst_8 : f32 to vector<1x8x128xf32>
      %20 = arith.mulf %19, %18 : vector<1x8x128xf32>
      %c0_9 = arith.constant 0 : index
      %c0_10 = arith.constant 0 : index
      %c0_11 = arith.constant 0 : index
      %21 = vector.load %arg4[%c0_9, %c0_10, %c0_11] : memref<1x8x128xf32, #tpu.memory_space<vmem>>, vector<1x8x128xf32>
      %22 = tpu.iota {dimensions = array<i32: 1>} : vector<1x8x128xi32>
      %23 = vector.broadcast %5 : i32 to vector<1x8x128xi32>
      %24 = arith.addi %22, %23 : vector<1x8x128xi32>
      %c8_i32_12 = arith.constant 8 : i32
      %25 = vector.broadcast %c8_i32_12 : i32 to vector<1x8x128xi32>
      %26 = arith.cmpi slt, %24, %25 : vector<1x8x128xi32>
      %cst_13 = arith.constant 0.000000e+00 : f32
      %27 = vector.broadcast %cst_13 : f32 to vector<1x8x128xf32>
      %28 = arith.select %26, %20, %27 : vector<1x8x128xi1>, vector<1x8x128xf32>
      %cst_14 = arith.constant 0.000000e+00 : f32
      %29 = vector.broadcast %cst_14 : f32 to vector<1x8x128xf32>
      %30 = arith.select %26, %21, %29 : vector<1x8x128xi1>, vector<1x8x128xf32>
      %31 = arith.mulf %28, %30 : vector<1x8x128xf32>
      %c0_15 = arith.constant 0 : index
      %c0_16 = arith.constant 0 : index
      %c0_17 = arith.constant 0 : index
      %c0_18 = arith.constant 0 : index
      %c0_19 = arith.constant 0 : index
      %32 = vector.load %arg5[%c0_15, %c0_16, %c0_17, %c0_18, %c0_19] : memref<1x1x3x8x128xf32, #tpu.memory_space<vmem>>, vector<1x1x1x8x128xf32>
      %33 = vector.shape_cast %32 : vector<1x1x1x8x128xf32> to vector<8x128xf32>
      %cst_20 = arith.constant dense<0.000000e+00> : vector<8x128xf32>
      %34 = vector.multi_reduction <add>, %31, %cst_20 [0] : vector<1x8x128xf32> to vector<8x128xf32>
      %35 = arith.addf %33, %34 : vector<8x128xf32>
      %c0_21 = arith.constant 0 : index
      %c0_22 = arith.constant 0 : index
      %c0_23 = arith.constant 0 : index
      %c0_24 = arith.constant 0 : index
      %c0_25 = arith.constant 0 : index
      %36 = vector.load %arg5[%c0_21, %c0_22, %c0_23, %c0_24, %c0_25] : memref<1x1x3x8x128xf32, #tpu.memory_space<vmem>>, vector<1x1x1x8x128xf32>
      %37 = vector.shape_cast %36 : vector<1x1x1x8x128xf32> to vector<8x128xf32>
      %38 = vector.shape_cast %35 : vector<8x128xf32> to vector<1x1x1x8x128xf32>
      tpu.vector_store %arg5[%c0_21, %c0_22, %c0_23, %c0_24, %c0_25], %38 {strides = array<i32>} : memref<1x1x3x8x128xf32, #tpu.memory_space<vmem>>, vector<1x1x1x8x128xf32>,
      %c0_26 = arith.constant 0 : index
      %c0_27 = arith.constant 0 : index
      %c1 = arith.constant 1 : index
      %c0_28 = arith.constant 0 : index
      %c0_29 = arith.constant 0 : index
      %39 = vector.load %arg5[%c0_26, %c0_27, %c1, %c0_28, %c0_29] : memref<1x1x3x8x128xf32, #tpu.memory_space<vmem>>, vector<1x1x1x8x128xf32>
      %40 = vector.shape_cast %39 : vector<1x1x1x8x128xf32> to vector<8x128xf32>
      %cst_30 = arith.constant dense<0.000000e+00> : vector<8x128xf32>
      %41 = vector.multi_reduction <add>, %28, %cst_30 [0] : vector<1x8x128xf32> to vector<8x128xf32>
      %42 = arith.addf %40, %41 : vector<8x128xf32>
      %c0_31 = arith.constant 0 : index
      %c0_32 = arith.constant 0 : index
      %c1_33 = arith.constant 1 : index
      %c0_34 = arith.constant 0 : index
      %c0_35 = arith.constant 0 : index
      %43 = vector.load %arg5[%c0_31, %c0_32, %c1_33, %c0_34, %c0_35] : memref<1x1x3x8x128xf32, #tpu.memory_space<vmem>>, vector<1x1x1x8x128xf32>
      %44 = vector.shape_cast %43 : vector<1x1x1x8x128xf32> to vector<8x128xf32>
      %45 = vector.shape_cast %42 : vector<8x128xf32> to vector<1x1x1x8x128xf32>
      tpu.vector_store %arg5[%c0_31, %c0_32, %c1_33, %c0_34, %c0_35], %45 {strides = array<i32>} : memref<1x1x3x8x128xf32, #tpu.memory_space<vmem>>, vector<1x1x1x8x128xf32>,
      %c0_36 = arith.constant 0 : index
      %c0_37 = arith.constant 0 : index
      %c2 = arith.constant 2 : index
      %c0_38 = arith.constant 0 : index
      %c0_39 = arith.constant 0 : index
      %46 = vector.load %arg5[%c0_36, %c0_37, %c2, %c0_38, %c0_39] : memref<1x1x3x8x128xf32, #tpu.memory_space<vmem>>, vector<1x1x1x8x128xf32>
      %47 = vector.shape_cast %46 : vector<1x1x1x8x128xf32> to vector<8x128xf32>
      %cst_40 = arith.constant dense<0.000000e+00> : vector<8x128xf32>
      %48 = vector.multi_reduction <add>, %30, %cst_40 [0] : vector<1x8x128xf32> to vector<8x128xf32>
      %49 = arith.addf %47, %48 : vector<8x128xf32>
      %c0_41 = arith.constant 0 : index
      %c0_42 = arith.constant 0 : index
      %c2_43 = arith.constant 2 : index
      %c0_44 = arith.constant 0 : index
      %c0_45 = arith.constant 0 : index
      %50 = vector.load %arg5[%c0_41, %c0_42, %c2_43, %c0_44, %c0_45] : memref<1x1x3x8x128xf32, #tpu.memory_space<vmem>>, vector<1x1x1x8x128xf32>
      %51 = vector.shape_cast %50 : vector<1x1x1x8x128xf32> to vector<8x128xf32>
      %52 = vector.shape_cast %49 : vector<8x128xf32> to vector<1x1x1x8x128xf32>
      tpu.vector_store %arg5[%c0_41, %c0_42, %c2_43, %c0_44, %c0_45], %52 {strides = array<i32>} : memref<1x1x3x8x128xf32, #tpu.memory_space<vmem>>, vector<1x1x1x8x128xf32>,
    } else {
    }
    return
  }
  func.func @transform_0(%arg0: i32, %arg1: i32, %arg2: i32) -> (i32, i32, i32) {
    %c1_i32 = arith.constant 1 : i32
    %0 = arith.muli %arg1, %c1_i32 : i32
    %1 = arith.addi %0, %arg2 : i32
    %c0_i32 = arith.constant 0 : i32
    %2 = arith.minsi %1, %c0_i32 : i32
    %c0_i32_0 = arith.constant 0 : i32
    %c0_i32_1 = arith.constant 0 : i32
    return %arg0, %2, %c0_i32_0 : i32, i32, i32
  }
  func.func @transform_1(%arg0: i32, %arg1: i32, %arg2: i32) -> (i32, i32, i32) {
    %c1_i32 = arith.constant 1 : i32
    %0 = arith.muli %arg1, %c1_i32 : i32
    %1 = arith.addi %0, %arg2 : i32
    %c0_i32 = arith.constant 0 : i32
    %2 = arith.minsi %1, %c0_i32 : i32
    %c0_i32_0 = arith.constant 0 : i32
    %c0_i32_1 = arith.constant 0 : i32
    return %arg0, %2, %c0_i32_0 : i32, i32, i32
  }
  func.func @transform_2(%arg0: i32, %arg1: i32, %arg2: i32) -> (i32, i32, i32, i32, i32) {
    %c0_i32 = arith.constant 0 : i32
    %c0_i32_0 = arith.constant 0 : i32
    %c0_i32_1 = arith.constant 0 : i32
    %c0_i32_2 = arith.constant 0 : i32
    return %arg0, %arg1, %c0_i32, %c0_i32_0, %c0_i32_1 : i32, i32, i32, i32, i32
  }
}

</mosaic_0001>

<llo_original>
// kernel: tpu_custom_call.1
$region0: #{tpu_custom_call.1}
  #allocation0 [shape = 'u32[]', space=smem, size = 0x4, offset = 0x4, fixed_abs, tag = 'smem constant byte address 0x4 - core index']
  #allocation1 [shape = 'u32[144,128]{1,0:T(1,128)}', space=vmem, size = 0x12000, scoped, tag = 'internal scratch']
  %s0 = inlined_call_operand.hbm [shape: f32[2,8,128], index: 0, kind: input, shape index: {}]
  %s1 = inlined_call_operand.hbm [shape: f32[2,8,128], index: 1, kind: input, shape index: {}]
  %s2 = inlined_call_operand.hbm [shape: f32[2,2,3,8,128], index: 2, kind: output, shape index: {}]
  %s3 = sld [smem:[#allocation0]]
  $region61: #{tpu_custom_call.1} parent=0
    _
  %s5 = ssub.s32 1, %s3
  %s6 = scalar_select 0, %s5, %s3
  $region1: #{tpu_custom_call.1} parent=0
    #allocation2 [shape = 'u8[8192]{0}', space=vmem, size = 0x2000, scoped, tag = 'input window, operand 0']
    #allocation3 [shape = 's32[2]{0}', space=sflag, size = 0x8, scoped, tag = 'scoped memory for tpu_custom_call.1']
    #allocation4 [shape = 's32[2]{0}', space=sflag, size = 0x8, scoped, tag = 'scoped memory for tpu_custom_call.1']
    #allocation5 [shape = 'u8[8192]{0}', space=vmem, size = 0x2000, scoped, tag = 'input window, operand 1']
    #allocation6 [shape = 's32[2]{0}', space=sflag, size = 0x8, scoped, tag = 'scoped memory for tpu_custom_call.1']
    #allocation7 [shape = 'u8[24576]{0}', space=vmem, size = 0x6000, scoped, tag = 'output window, operand 0']
    %7 = vsyncpa [#allocation3], 0
    %s8 = scalar_lea.sflag [#allocation3], 1
    %9 = vsyncpa %s8, 0
    %10 = vsyncpa [#allocation6], 0
    %s11 = scalar_lea.sflag [#allocation6], 1
    %12 = vsyncpa %s11, 0
    %13 = vsyncpa [#allocation4], 0
    %s14 = scalar_lea.sflag [#allocation4], 1
    %15 = vsyncpa %s14, 0
    loop: start=0, step=1, limit=6
    $region2: #{tpu_custom_call.1} parent=1 // loop_pre_header
      _
    $region3: #{tpu_custom_call.1} parent=1 // loop_header
      %s17 = sphi 0, %s21
      %p18 = scmp.ge.s32.totalorder %s17, 6
      %s24 = sphi 0, %s43
      %s25 = sphi 0, %s39
      %s26 = sphi 0, %s35
      %s27 = sphi 0, %s24
      %s28 = sphi 0, %s25
      %s29 = sphi 0, %s26
      %s30 = sphi 0, %s27
      %s31 = sphi 0, %s28
      %s32 = sphi 0, %s29
      %s54 = sphi 0, %s56
      %s57 = sphi 0, %s54
      %s58 = sphi 0, %s57
      %s74 = sphi 0, %s58
      %s88 = sphi 0, %s90
      %s91 = sphi 0, %s88
      %s92 = sphi 0, %s91
      %s108 = sphi 0, %s92
      %s116 = sphi 0, %s118
      %s119 = sphi 0, %s116
      %s120 = sphi 0, %s119
      %s136 = sphi 0, %s120
    $region4: #{tpu_custom_call.1} parent=1 // loop_header_branch
      %20 = sbr.rel (%p18) target = $region8
    $region5: #{tpu_custom_call.1} parent=1 // loop_body
      %s22 = ssub.s32 %s17, 1
      %s23 = ssub.s32 %s17, 2
      %s33 = sadd.s32 1, %s26
      %p34 = scmp.ge.s32.totalorder %s33, 1
      %s35 = scalar_select %p34, 0, %s33
      %s36 = sadd.s32 1, %s25
      %s37 = scalar_select %p34, %s36, %s25
      %p38 = scmp.ge.s32.totalorder %s37, 2
      %s39 = scalar_select %p38, 0, %s37
      %s40 = sadd.s32 1, %s24
      %s41 = scalar_select %p38, %s40, %s24
      %p42 = scmp.ge.s32.totalorder %s41, 2
      %s43 = scalar_select %p42, 0, %s41
      %s44 = sadd.s32 %s25, %s26
      %p45 = scmp.lt.s32.totalorder %s44, 0
      %s46 = scalar_select %p45, %s44, 0
      %s47 = sadd.s32 %s39, %s35
      %p48 = scmp.lt.s32.totalorder %s47, 0
      %s49 = scalar_select %p48, %s47, 0
      %s50 = ssub.s32 %s24, %s43
      %s51 = ssub.s32 %s46, %s49
      %s52 = sor.u32 %s50, %s51
      %p53 = scmp.eq.s32.totalorder %s52, 0
      %s55 = sadd.s32 %s54, 1
      %s56 = scalar_select %p53, %s54, %s55
      %p59 = pneg %p53
      %p60 = scmp.eq.s32.totalorder %s17, 3
      %p61 = por %p59, %p60
      %p62 = scmp.ne.s32.totalorder %s54, %s57
      %p63 = scmp.eq.s32.totalorder %s17, 0
      %p64 = por %p62, %p63
      %p65 = scmp.ne.s32.totalorder %s54, %s57
      %p66 = scmp.eq.s32.totalorder %s22, 3
      %p67 = por %p65, %p66
      %p68 = scmp.ne.s32.totalorder %s57, %s58
      %p69 = scmp.eq.s32.totalorder %s22, 0
      %p70 = por %p68, %p69
      %p71 = scmp.ne.s32.totalorder %s57, %s58
      %p72 = scmp.eq.s32.totalorder %s23, 3
      %p73 = por %p71, %p72
      %p75 = scmp.ne.s32.totalorder %s58, %s74
      %p76 = scmp.eq.s32.totalorder %s23, 0
      %p77 = por %p75, %p76
      %s78 = sadd.s32 %s25, %s26
      %p79 = scmp.lt.s32.totalorder %s78, 0
      %s80 = scalar_select %p79, %s78, 0
      %s81 = sadd.s32 %s39, %s35
      %p82 = scmp.lt.s32.totalorder %s81, 0
      %s83 = scalar_select %p82, %s81, 0
      %s84 = ssub.s32 %s24, %s43
      %s85 = ssub.s32 %s80, %s83
      %s86 = sor.u32 %s84, %s85
      %p87 = scmp.eq.s32.totalorder %s86, 0
      %s89 = sadd.s32 %s88, 1
      %s90 = scalar_select %p87, %s88, %s89
      %p93 = pneg %p87
      %p94 = scmp.eq.s32.totalorder %s17, 3
      %p95 = por %p93, %p94
      %p96 = scmp.ne.s32.totalorder %s88, %s91
      %p97 = scmp.eq.s32.totalorder %s17, 0
      %p98 = por %p96, %p97
      %p99 = scmp.ne.s32.totalorder %s88, %s91
      %p100 = scmp.eq.s32.totalorder %s22, 3
      %p101 = por %p99, %p100
      %p102 = scmp.ne.s32.totalorder %s91, %s92
      %p103 = scmp.eq.s32.totalorder %s22, 0
      %p104 = por %p102, %p103
      %p105 = scmp.ne.s32.totalorder %s91, %s92
      %p106 = scmp.eq.s32.totalorder %s23, 3
      %p107 = por %p105, %p106
      %p109 = scmp.ne.s32.totalorder %s92, %s108
      %p110 = scmp.eq.s32.totalorder %s23, 0
      %p111 = por %p109, %p110
      %s112 = ssub.s32 %s24, %s43
      %s113 = ssub.s32 %s25, %s39
      %s114 = sor.u32 %s112, %s113
      %p115 = scmp.eq.s32.totalorder %s114, 0
      %s117 = sadd.s32 %s116, 1
      %s118 = scalar_select %p115, %s116, %s117
      %p121 = pneg %p115
      %p122 = scmp.eq.s32.totalorder %s17, 3
      %p123 = por %p121, %p122
      %p124 = scmp.ne.s32.totalorder %s116, %s119
      %p125 = scmp.eq.s32.totalorder %s17, 0
      %p126 = por %p124, %p125
      %p127 = scmp.ne.s32.totalorder %s116, %s119
      %p128 = scmp.eq.s32.totalorder %s22, 3
      %p129 = por %p127, %p128
      %p130 = scmp.ne.s32.totalorder %s119, %s120
      %p131 = scmp.eq.s32.totalorder %s22, 0
      %p132 = por %p130, %p131
      %p133 = scmp.ne.s32.totalorder %s119, %s120
      %p134 = scmp.eq.s32.totalorder %s23, 3
      %p135 = por %p133, %p134
      %p137 = scmp.ne.s32.totalorder %s120, %s136
      %p138 = scmp.eq.s32.totalorder %s23, 0
      %p139 = por %p137, %p138
      %p140 = scmp.le.s32.totalorder 1, %s17
      %p141 = scmp.lt.s32.totalorder %s17, 5
      %p142 = pnand %p140, %p141
      %p143 = pneg %p142
      // Predicated region
      $region9: #{tpu_custom_call.1} parent=5 // pred_check
        _
      $region10: #{tpu_custom_call.1} parent=5 // pred_check_branch
        %145 = sbr.rel (%p142) target = $region12
      $region11: #{tpu_custom_call.1} parent=5 // pred_region
        %s146 = ssub.s32 %s17, 1
      $region12: #{tpu_custom_call.1} parent=5 // pred_fallthru
        _
      %p147 = scmp.lt.s32.totalorder %s17, 4
      // Predicated region
      $region13: #{tpu_custom_call.1} parent=5 // pred_check
        %p148 = pneg %p147
      $region14: #{tpu_custom_call.1} parent=5 // pred_check_branch
        %150 = sbr.rel (%p148) target = $region16
      $region15: #{tpu_custom_call.1} parent=5 // pred_region
        // Predicated region
        $region17: #{tpu_custom_call.1} parent=15 // pred_check
          %p151 = pneg %p64
        $region18: #{tpu_custom_call.1} parent=15 // pred_check_branch
          %153 = sbr.rel (%p151) target = $region20
        $region19: #{tpu_custom_call.1} parent=15 // pred_region
          %s154 = sand.u32 %s54, 1
          %s155 = scalar_lea.sflag [#allocation3], %s154
          %s156 = sand.u32 %s54, 1
          %s157 = smul.addr %s156, 8
          %s158 = scalar_lea.vmem [#allocation2], %s157
          %s159 = sadd.s32 %s25, %s26
          %p160 = scmp.lt.s32.totalorder %s159, 0
          %s161 = scalar_select %p160, %s159, 0
          %s163 = ssub.s32 128, 128
          %164 = vsyncadd %s155, %s163
          %s165 = sadd.s32 %s161, %s24
          %s166 = smul.addr %s165, 128
          %s167 = scalar_lea.hbm %s0, %s166
          %s169 = sshll.u32 %s158, 4
          %s170 = int_to_ptr.vmem [resolvable:$true] %s169
          %172 = dma.hbm_to_vmem [thread:$0]  %s167, 128, %s170, %s155
        $region20: #{tpu_custom_call.1} parent=15 // pred_fallthru
          _
        // Predicated region
        $region21: #{tpu_custom_call.1} parent=15 // pred_check
          %p173 = pneg %p98
        $region22: #{tpu_custom_call.1} parent=15 // pred_check_branch
          %175 = sbr.rel (%p173) target = $region24
        $region23: #{tpu_custom_call.1} parent=15 // pred_region
          %s176 = sand.u32 %s88, 1
          %s177 = scalar_lea.sflag [#allocation6], %s176
          %s178 = sand.u32 %s88, 1
          %s179 = smul.addr %s178, 8
          %s180 = scalar_lea.vmem [#allocation5], %s179
          %s181 = sadd.s32 %s25, %s26
          %p182 = scmp.lt.s32.totalorder %s181, 0
          %s183 = scalar_select %p182, %s181, 0
          %s185 = ssub.s32 128, 128
          %186 = vsyncadd %s177, %s185
          %s187 = sadd.s32 %s183, %s24
          %s188 = smul.addr %s187, 128
          %s189 = scalar_lea.hbm %s1, %s188
          %s191 = sshll.u32 %s180, 4
          %s192 = int_to_ptr.vmem [resolvable:$true] %s191
          %194 = dma.hbm_to_vmem [thread:$0]  %s189, 128, %s192, %s177
        $region24: #{tpu_custom_call.1} parent=15 // pred_fallthru
          _
      $region16: #{tpu_custom_call.1} parent=5 // pred_fallthru
        _
      %p195 = scmp.le.s32.totalorder 1, %s17
      %p196 = scmp.lt.s32.totalorder %s17, 5
      %p197 = pnand %p195, %p196
      %p198 = pneg %p197
      // Predicated region
      $region25: #{tpu_custom_call.1} parent=5 // pred_check
        _
      $region26: #{tpu_custom_call.1} parent=5 // pred_check_branch
        %200 = sbr.rel (%p197) target = $region28
      $region27: #{tpu_custom_call.1} parent=5 // pred_region
        %s201 = ssub.s32 %s17, 1
        %s202 = sand.u32 %s57, 1
        %s203 = scalar_lea.sflag [#allocation3], %s202
        %s204 = sand.u32 %s57, 1
        %s205 = smul.addr %s204, 8
        %s206 = scalar_lea.vmem [#allocation2], %s205
        // Predicated region
        $region29: #{tpu_custom_call.1} parent=27 // pred_check
          %p207 = pneg %p70
        $region30: #{tpu_custom_call.1} parent=27 // pred_check_branch
          %209 = sbr.rel (%p207) target = $region32
        $region31: #{tpu_custom_call.1} parent=27 // pred_region
          %210 = dma.done %s203, 128
        $region32: #{tpu_custom_call.1} parent=27 // pred_fallthru
          _
        %s211 = sand.u32 %s91, 1
        %s212 = scalar_lea.sflag [#allocation6], %s211
        %s213 = sand.u32 %s91, 1
        %s214 = smul.addr %s213, 8
        %s215 = scalar_lea.vmem [#allocation5], %s214
        // Predicated region
        $region33: #{tpu_custom_call.1} parent=27 // pred_check
          %p216 = pneg %p104
        $region34: #{tpu_custom_call.1} parent=27 // pred_check_branch
          %218 = sbr.rel (%p216) target = $region36
        $region35: #{tpu_custom_call.1} parent=27 // pred_region
          %219 = dma.done %s212, 128
        $region36: #{tpu_custom_call.1} parent=27 // pred_fallthru
          _
        %s220 = sand.u32 %s57, 1
        %s221 = scalar_lea.sflag [#allocation3], %s220
        %s222 = sand.u32 %s57, 1
        %s223 = smul.addr %s222, 8
        %s224 = scalar_lea.vmem [#allocation2], %s223
        %p225 = pneg %p70
        %p226 = pneg %p67
        %s227 = sand.u32 %s91, 1
        %s228 = scalar_lea.sflag [#allocation6], %s227
        %s229 = sand.u32 %s91, 1
        %s230 = smul.addr %s229, 8
        %s231 = scalar_lea.vmem [#allocation5], %s230
        %p232 = pneg %p104
        %p233 = pneg %p101
        %p234 = pneg %p132
        %p235 = pneg %p129
        %s236 = sand.u32 %s119, 1
        %s237 = scalar_lea.sflag [#allocation4], %s236
        %s238 = sand.u32 %s119, 1
        %s239 = smul.addr %s238, 24
        %s240 = scalar_lea.vmem [#allocation7], %s239
        %s241 = sadd.s32 %s28, %s29
        %p242 = scmp.lt.s32.totalorder %s241, 0
        %s243 = scalar_select %p242, %s241, 0
        %s244 = sadd.s32 %s28, %s29
        %p245 = scmp.lt.s32.totalorder %s244, 0
        %s246 = scalar_select %p245, %s244, 0
        %p247 = scmp.eq.s32.totalorder %s29, 0
        // Predicated region
        $region37: #{tpu_custom_call.1} parent=27 // pred_check
          %p248 = pneg %p247
        $region38: #{tpu_custom_call.1} parent=27 // pred_check_branch
          %250 = sbr.rel (%p248) target = $region40
        $region39: #{tpu_custom_call.1} parent=27 // pred_region
          %251 = vst [vmem:[%s240] sm:$0xff] 0.0
          %252 = vst [vmem:[%s240 + $0x8] sm:$0xff] 0.0
          %253 = vst [vmem:[%s240 + $0x10] sm:$0xff] 0.0
        $region40: #{tpu_custom_call.1} parent=27 // pred_fallthru
          _
        %s254 = sadd.s32 %s28, %s29
        %s255 = smul.u32 %s254, 8
        %s256 = sadd.s32 %s255, 8
        %p257 = scmp.le.s32.totalorder %s256, 8
        // Predicated region
        $region41: #{tpu_custom_call.1} parent=27 // pred_check
          %p258 = pneg %p257
        $region42: #{tpu_custom_call.1} parent=27 // pred_check_branch
          %260 = sbr.rel (%p258) target = $region44
        $region43: #{tpu_custom_call.1} parent=27 // pred_region
          %v261 = vld [vmem:[%s206] sm:$0xff]
          %v262 = vmul.f32 %v261, 0.5
          %v263 = vtanh.pop %v262
          %v264 = vadd.f32 %v263, 1.0
          %v265 = vmul.f32 %v264, 0.5
          %v266 = vld [vmem:[%s215] sm:$0xff]
          %v267 = vmul.f32 %v265, %v266
          %v268 = vld [vmem:[%s240] sm:$0xff]
          %v269 = vadd.f32 %v267, 0.0
          %v270 = vadd.f32 %v268, %v269
          %271 = vst [vmem:[%s240] sm:$0xff] %v270
          %s272 = scalar_lea.vmem %s240, 8 [#allocation7]
          %v273 = vld [vmem:[%s272] sm:$0xff]
          %v274 = vadd.f32 %v265, 0.0
          %v275 = vadd.f32 %v273, %v274
          %276 = vst [vmem:[%s272] sm:$0xff] %v275
          %s277 = scalar_lea.vmem %s240, 16 [#allocation7]
          %v278 = vld [vmem:[%s277] sm:$0xff]
          %v279 = vadd.f32 %v266, 0.0
          %v280 = vadd.f32 %v278, %v279
          %281 = vst [vmem:[%s277] sm:$0xff] %v280
        $region44: #{tpu_custom_call.1} parent=27 // pred_fallthru
          _
        %p282 = scmp.gt.s32.totalorder %s256, 8
        // Predicated region
        $region45: #{tpu_custom_call.1} parent=27 // pred_check
          %p283 = pneg %p282
        $region46: #{tpu_custom_call.1} parent=27 // pred_check_branch
          %285 = sbr.rel (%p283) target = $region48
        $region47: #{tpu_custom_call.1} parent=27 // pred_region
          %v286 = vld [vmem:[%s206] sm:$0xff]
          %v287 = vmul.f32 %v286, 0.5
          %v288 = vtanh.pop %v287
          %v289 = vadd.f32 %v288, 1.0
          %v290 = vmul.f32 %v289, 0.5
          %v291 = vld [vmem:[%s215] sm:$0xff]
          %v292 = vlaneseq
          %v293 = vshrl.u32 %v292, 7
          %v294 = vstv %s255
          %v295 = vadd.s32 %v293, %v294
          %vm296 = vcmp.lt.s32.totalorder %v295, 8
          %v297 = vsel %vm296, %v290, 0.0
          %v298 = vsel %vm296, %v291, 0.0
          %v299 = vmul.f32 %v297, %v298
          %v300 = vld [vmem:[%s240] sm:$0xff]
          %v301 = vadd.f32 %v299, 0.0
          %v302 = vadd.f32 %v300, %v301
          %303 = vst [vmem:[%s240] sm:$0xff] %v302
          %s304 = scalar_lea.vmem %s240, 8 [#allocation7]
          %v305 = vld [vmem:[%s304] sm:$0xff]
          %v306 = vadd.f32 %v297, 0.0
          %v307 = vadd.f32 %v305, %v306
          %308 = vst [vmem:[%s304] sm:$0xff] %v307
          %s309 = scalar_lea.vmem %s240, 16 [#allocation7]
          %v310 = vld [vmem:[%s309] sm:$0xff]
          %v311 = vadd.f32 %v298, 0.0
          %v312 = vadd.f32 %v310, %v311
          %313 = vst [vmem:[%s309] sm:$0xff] %v312
        $region48: #{tpu_custom_call.1} parent=27 // pred_fallthru
          _
        %s314 = sand.u32 %s119, 1
        %s315 = scalar_lea.sflag [#allocation4], %s314
        %s316 = sand.u32 %s119, 1
        %s317 = smul.addr %s316, 24
        %s318 = scalar_lea.vmem [#allocation7], %s317
        // Predicated region
        $region49: #{tpu_custom_call.1} parent=27 // pred_check
          %p319 = pneg %p129
        $region50: #{tpu_custom_call.1} parent=27 // pred_check_branch
          %321 = sbr.rel (%p319) target = $region52
        $region51: #{tpu_custom_call.1} parent=27 // pred_region
          %s323 = ssub.s32 384, 384
          %324 = vsyncadd %s315, %s323
          %s325 = smul.addr %s28, 3
          %s326 = smul.addr %s27, 6
          %s327 = sadd.s32 %s325, %s326
          %s328 = smul.addr %s327, 128
          %s329 = scalar_lea.hbm %s2, %s328
          %s330 = sshll.u32 %s318, 4
          %s331 = int_to_ptr.vmem [resolvable:$true] %s330
          %336 = dma.vmem_to_hbm [thread:$0]  %s331, 384, %s329, %s315, 128, 128, 8
        $region52: #{tpu_custom_call.1} parent=27 // pred_fallthru
          _
      $region28: #{tpu_custom_call.1} parent=5 // pred_fallthru
        _
      %p337 = scmp.le.s32.totalorder 2, %s17
      // Predicated region
      $region53: #{tpu_custom_call.1} parent=5 // pred_check
        %p338 = pneg %p337
      $region54: #{tpu_custom_call.1} parent=5 // pred_check_branch
        %340 = sbr.rel (%p338) target = $region56
      $region55: #{tpu_custom_call.1} parent=5 // pred_region
        %s341 = ssub.s32 %s17, 2
        // Predicated region
        $region57: #{tpu_custom_call.1} parent=55 // pred_check
          %p342 = pneg %p135
        $region58: #{tpu_custom_call.1} parent=55 // pred_check_branch
          %344 = sbr.rel (%p342) target = $region60
        $region59: #{tpu_custom_call.1} parent=55 // pred_region
          %s345 = sand.u32 %s120, 1
          %s346 = scalar_lea.sflag [#allocation4], %s345
          %s347 = sand.u32 %s120, 1
          %s348 = smul.addr %s347, 24
          %s349 = scalar_lea.vmem [#allocation7], %s348
          %350 = dma.done %s346, 384
        $region60: #{tpu_custom_call.1} parent=55 // pred_fallthru
          _
      $region56: #{tpu_custom_call.1} parent=5 // pred_fallthru
        _
    $region6: #{tpu_custom_call.1} parent=1 // loop_footer
      %s21 = sadd.s32 1, %s17
    $region7: #{tpu_custom_call.1} parent=1 // loop_footer_branch
      %16 = sbr.rel target = $region3
    $region8: #{tpu_custom_call.1} parent=1 // loop_exit
      _
    %351 = vsyncpa [#allocation3], 1
    %s352 = scalar_lea.sflag [#allocation3], 1
    %353 = vsyncpa %s352, 1
    %354 = vsyncpa [#allocation6], 1
    %s355 = scalar_lea.sflag [#allocation6], 1
    %356 = vsyncpa %s355, 1
    %357 = vsyncpa [#allocation4], 1
    %s358 = scalar_lea.sflag [#allocation4], 1
    %359 = vsyncpa %s358, 1

</llo_original>
